<compile_context>
chip_gen: v5e
topology: v5e:2x2
jax: 0.10.0
libtpu: 0.0.40
codegen_flags: <defaults>
</compile_context>

<pallas_src>
import jax
import jax.numpy as jnp
from jax import lax
from jax.experimental import pallas as pl
from jax.experimental.pallas import tpu as pltpu


# --------------------------------------------------------------------------
# Fused kernel: running max/min over W -> per-channel affine + relu -> final
# flat output column.  Input is the pre-sliced (hs, W) row slab, untransposed.
# --------------------------------------------------------------------------
def fused_forward_pallas(x_rows, scale_c, bias_c, *, cs, hs, lane_tile=1024):
    """x_rows  : (hs, W) f32 -- consumed H-rows of the (N=1, C=1) plane; W on lanes.
       scale_c : (cs,) f32  -- folded per-kept-channel affine scale (SMEM).
       bias_c  : (cs,) f32  -- folded per-kept-channel affine bias  (SMEM).
       Returns (cs*hs, 1) f32; its row-major flat order is the final output."""
    hs_, W = x_rows.shape
    assert hs_ == hs

    # Tile the reduction (W) axis so big planes never exceed scoped VMEM.
    if W <= lane_tile:
        tw = W                       # single block; block dims == full dims
    else:
        assert lane_tile % 128 == 0
        tw = lane_tile
    nblk = pl.cdiv(W, tw)
    need_mask = (W % tw) != 0        # ragged last tile -> mask padded lanes

    def kernel(scale_ref, bias_ref, x_ref, o_ref, mx_ref, mn_ref):
        k = pl.program_id(0)

        @pl.when(k == 0)
        def _():
            mx_ref[...] = jnp.full((hs, 1), -jnp.inf, jnp.float32)
            mn_ref[...] = jnp.full((hs, 1), jnp.inf, jnp.float32)

        xv = x_ref[...]                                          # (hs, tw)
        if need_mask:
            lane = k * tw + lax.broadcasted_iota(jnp.int32, xv.shape, 1)
            valid = lane < W
            xv_hi = jnp.where(valid, xv, -jnp.inf)
            xv_lo = jnp.where(valid, xv, jnp.inf)
        else:
            xv_hi = xv_lo = xv

        # Lane-axis (W) reductions -> running accumulators.
        mx_ref[...] = jnp.maximum(mx_ref[...],
                                  jnp.max(xv_hi, axis=-1, keepdims=True))
        mn_ref[...] = jnp.minimum(mn_ref[...],
                                  jnp.min(xv_lo, axis=-1, keepdims=True))

        @pl.when(k == nblk - 1)
        def _():
            m_max = mx_ref[...]                                  # (hs, 1)
            m_min = mn_ref[...]                                  # (hs, 1)
            for ci in range(cs):                                 # cs tiny & static
                sc = scale_ref[ci]
                # max_W(relu(sc*x + b)) == relu(max(sc*m_max, sc*m_min) + b)
                # (covers sc < 0); the original's trailing relu is folded in.
                v = jnp.maximum(sc * m_max, sc * m_min) + bias_ref[ci]
                v = jnp.maximum(v, 0.0)                          # (hs, 1)
                o_ref[ci * hs:(ci + 1) * hs, :] = v              # sublane-slice store

    # TODO(synk): on v7x a 2-TensorCore split of the W reduction (leading
    # "parallel" axis of size 2 + partial-combine) could give ~2x for very
    # large planes; omitted here since it is a no-op on v5e/v6e.
    return pl.pallas_call(
        kernel,
        out_shape=jax.ShapeDtypeStruct((cs * hs, 1), jnp.float32),
        grid=(nblk,),
        in_specs=[
            pl.BlockSpec(memory_space=pltpu.MemorySpace.SMEM),   # scale (cs,)
            pl.BlockSpec(memory_space=pltpu.MemorySpace.SMEM),   # bias  (cs,)
            pl.BlockSpec((hs, tw), lambda k: (0, k)),            # x rows, W-tiled
        ],
        out_specs=pl.BlockSpec((cs * hs, 1), lambda k: (0, 0)),  # resident output
        scratch_shapes=[pltpu.VMEM((hs, 1), jnp.float32),        # running max
                        pltpu.VMEM((hs, 1), jnp.float32)],       # running min
        compiler_params=pltpu.CompilerParams(
            dimension_semantics=("arbitrary",)),
    )(scale_c, bias_c, x_rows)


# --------------------------------------------------------------------------
# Parameters (shapes exactly as declared in Model.__init__), deterministic.
# --------------------------------------------------------------------------
def init_params(key):
    ks = jax.random.split(key, 12)
    return {
        # model1
        "m1_w1": jax.random.normal(ks[0], (1, 1, 1, 1), jnp.float32),
        "m1_b1": jax.random.normal(ks[1], (1,), jnp.float32),
        "m1_w2": jax.random.normal(ks[2], (4, 20, 1, 1), jnp.float32) * 0.1,
        "m1_b2": jax.random.normal(ks[3], (4,), jnp.float32),
        # model3 (declared but its output y6 is unused by the forward)
        "m3_w1": jax.random.normal(ks[4], (1, 1, 1, 1), jnp.float32),
        "m3_b1": jax.random.normal(ks[5], (1,), jnp.float32),
        "m3_w2": jax.random.normal(ks[6], (4, 20, 2, 2), jnp.float32),
        "m3_b2": jax.random.normal(ks[7], (4,), jnp.float32),
        "m3_w3": jax.random.normal(ks[8], (1, 1, 1, 1), jnp.float32),
        "m3_b3": jax.random.normal(ks[9], (1,), jnp.float32),
        "m3_w4": jax.random.normal(ks[10], (5, 4, 2, 2), jnp.float32),
        "m3_b4": jax.random.normal(ks[11], (5,), jnp.float32),
    }


# --------------------------------------------------------------------------
# One-time parameter folding (off the hot path).
# TODO(synk): original model1 chains Conv2d(1,1) -> Conv2d(20,4), which is
# channel-inconsistent; the 1-channel activation is broadcast to the 20
# expected inputs, making w2 @ bcast(h,20) == rowsum(w2)*h exactly, so the
# whole chain collapses to a per-output-channel affine.
# --------------------------------------------------------------------------
def fold_model1_affine(params):
    w1 = params["m1_w1"].reshape(())
    b1 = params["m1_b1"].reshape(())
    rs = params["m1_w2"].reshape(4, 20).sum(axis=1)          # (4,)
    scale = rs * w1                                          # (4,)
    bias = rs * b1 + params["m1_b2"]                         # (4,)
    return scale, bias


# --------------------------------------------------------------------------
# Forward (mirrors Model.forward; repairs marked TODO(synk)).  Run under jit.
# --------------------------------------------------------------------------
def forward(x, scale4, bias4, *, lane_tile=1024):
    n, c_in, H, W = x.shape
    assert n == 1 and c_in == 1, "repaired path expects N=1, C_in=1"

    # Slice bounds from y3 = zeros_like(x) (only its shape is used).
    s = int(H * 0.5)
    e = H
    hs = e - s                      # rows kept
    cs = min(e, 4) - s              # channels kept (aten::slice clamps end to 4)
    assert cs > 0 and hs > 0
    # TODO(synk): original .view((N,4,...)) is numel-invalid unless cs*hs % 4 == 0;
    # for other H/W the repaired reshape would raise, so guard it.
    assert (cs * hs) % 4 == 0

    # Only the consumed rows leave HBM (no transpose, no full-plane copy).
    x_rows = lax.slice(x, (0, 0, s, 0), (1, 1, e, W)).reshape(hs, W)
    # Pre-sliced (cs,) affine params for SMEM: no in-kernel offset arithmetic,
    # no OOB-SMEM hazard if the slice-clamp logic ever changes.
    scale_c = lax.slice(scale4, (s,), (s + cs,))
    bias_c = lax.slice(bias4, (s,), (s + cs,))

    # TODO(synk): y1 zeros/view/expand chain is numel-invalid and only its shape
    # feeds another invalid view -- not materialized.
    # TODO(synk): y5 = Identity()(x.shape[1]) is an unused int; y6 = model3(x)
    # is channel-inconsistent and unused -- both omitted.
    # TODO(synk): the original's trailing .view indexes shape[3] of a 3-D tensor
    # (IndexError); skipped.  The permute+flatten is a no-op on flat order, so
    # the kernel's flat (cs*hs,1) column is the final result.
    flat = fused_forward_pallas(x_rows, scale_c, bias_c,
                                cs=cs, hs=hs, lane_tile=lane_tile)
    return flat.reshape(1, 1, cs * hs)    # metadata-only reshape under jit


# --------------------------------------------------------------------------
# Pure-JAX reference of the (un-fused, un-collapsed) repaired path, used only
# to validate the algebraic collapse + fusion + reduce-first reordering.
# --------------------------------------------------------------------------
def forward_reference(x, params):
    n, c_in, H, W = x.shape
    hw = H * W
    h = x.reshape(1, hw) * params["m1_w1"].reshape(1) + params["m1_b1"].reshape(1)
    h20 = jnp.broadcast_to(h, (20, hw))
    y4 = jnp.dot(params["m1_w2"].reshape(4, 20), h20) + params["m1_b2"][:, None]
    y4 = y4.reshape(1, 4, H, W)
    s = int(H * 0.5)
    e = H
    y4s = y4[:, s:min(e, 4), s:e, :]
    m = jnp.maximum(jnp.max(jnp.maximum(y4s, 0.0), axis=-1), 0.0)
    cs, hs = y4s.shape[1], y4s.shape[2]
    y4r = m.reshape(1, 4, 1, (cs * hs) // 4)
    y4t = jnp.transpose(y4r, (0, 2, 1, 3))
    return y4t.reshape(1, 1, cs * hs)


if __name__ == "__main__":
    key = jax.random.PRNGKey(0)
    k_param, k_x1, k_x2 = jax.random.split(key, 3)
    params = init_params(k_param)
    scale4, bias4 = fold_model1_affine(params)     # folded once, off the hot path

    fwd = jax.jit(forward, static_argnames=("lane_tile",))

    # Small plane consistent with the 1x1-conv / slice path (single block).
    x = jax.random.normal(k_x1, (1, 1, 4, 16), dtype=jnp.float32)
    out = jax.block_until_ready(fwd(x, scale4, bias4, lane_tile=1024))
    assert out.shape == (1, 1, 4), out.shape
    ref = forward_reference(x, params)
    assert jnp.allclose(out, ref, rtol=1e-4, atol=1e-5), (out, ref)

    # Wider plane: exercises the W-tiled grid + ragged-tail lane masking path.
    x_wide = jax.random.normal(k_x2, (1, 1, 4, 640), dtype=jnp.float32)
    out_w = jax.block_until_ready(fwd(x_wide, scale4, bias4, lane_tile=256))
    ref_w = forward_reference(x_wide, params)
    assert out_w.shape == ref_w.shape, (out_w.shape, ref_w.shape)
    assert jnp.allclose(out_w, ref_w, rtol=1e-4, atol=1e-5), (out_w, ref_w)

    print("KERNEL_OK")
</pallas_src>

<mosaic_0001>
module attributes {stable_mosaic.version = 11 : i64} {
  func.func @kernel(%arg0: i32, %arg1: memref<2xf32, #tpu.memory_space<smem>>, %arg2: memref<2xf32, #tpu.memory_space<smem>>, %arg3: memref<2x16xf32, #tpu.memory_space<vmem>>, %arg4: memref<4x1xf32, #tpu.memory_space<vmem>>, %arg5: memref<2x1xf32, #tpu.memory_space<vmem>>, %arg6: memref<2x1xf32, #tpu.memory_space<vmem>>) attributes {dimension_semantics = [#tpu.dimension_semantics<arbitrary>], iteration_bounds = array<i64: 1>, scalar_prefetch = 0 : i64, scratch_operands = 2 : i64, tpu.core_type = #tpu.core_type<tc>, window_params = [{transform_indices = @transform_0, window_bounds = array<i64: 2>}, {transform_indices = @transform_1, window_bounds = array<i64: 2>}, {transform_indices = @transform_2, window_bounds = array<i64: 2, 16>}, {pipeline_mode = #tpu.pipeline_mode<synchronous>, transform_indices = @transform_3, window_bounds = array<i64: 4, 1>}]} {
    %c0_i32 = arith.constant 0 : i32
    %0 = arith.cmpi eq, %arg0, %c0_i32 : i32
    %1 = arith.extui %0 : i1 to i32
    %c0_i32_0 = arith.constant 0 : i32
    %2 = arith.cmpi ne, %1, %c0_i32_0 : i32
    scf.if %2 {
      %cst_13 = arith.constant 0xFF800000 : f32
      %17 = vector.broadcast %cst_13 : f32 to vector<2x1xf32>
      %c0_14 = arith.constant 0 : index
      %c0_15 = arith.constant 0 : index
      %18 = vector.load %arg5[%c0_14, %c0_15] : memref<2x1xf32, #tpu.memory_space<vmem>>, vector<2x1xf32>
      tpu.vector_store %arg5[%c0_14, %c0_15], %17 {strides = array<i32>} : memref<2x1xf32, #tpu.memory_space<vmem>>, vector<2x1xf32>,
      %cst_16 = arith.constant 0x7F800000 : f32
      %19 = vector.broadcast %cst_16 : f32 to vector<2x1xf32>
      %c0_17 = arith.constant 0 : index
      %c0_18 = arith.constant 0 : index
      %20 = vector.load %arg6[%c0_17, %c0_18] : memref<2x1xf32, #tpu.memory_space<vmem>>, vector<2x1xf32>
      tpu.vector_store %arg6[%c0_17, %c0_18], %19 {strides = array<i32>} : memref<2x1xf32, #tpu.memory_space<vmem>>, vector<2x1xf32>,
    } else {
    }
    %c0 = arith.constant 0 : index
    %c0_1 = arith.constant 0 : index
    %3 = vector.load %arg3[%c0, %c0_1] : memref<2x16xf32, #tpu.memory_space<vmem>>, vector<2x16xf32>
    %c0_2 = arith.constant 0 : index
    %c0_3 = arith.constant 0 : index
    %4 = vector.load %arg5[%c0_2, %c0_3] : memref<2x1xf32, #tpu.memory_space<vmem>>, vector<2x1xf32>
    %cst = arith.constant dense<0xFF800000> : vector<2xf32>
    %5 = vector.multi_reduction <maximumf>, %3, %cst [1] : vector<2x16xf32> to vector<2xf32>
    %6 = vector.shape_cast %5 : vector<2xf32> to vector<2x1xf32>
    %7 = arith.maximumf %4, %6 : vector<2x1xf32>
    %c0_4 = arith.constant 0 : index
    %c0_5 = arith.constant 0 : index
    %8 = vector.load %arg5[%c0_4, %c0_5] : memref<2x1xf32, #tpu.memory_space<vmem>>, vector<2x1xf32>
    tpu.vector_store %arg5[%c0_4, %c0_5], %7 {strides = array<i32>} : memref<2x1xf32, #tpu.memory_space<vmem>>, vector<2x1xf32>,
    %c0_6 = arith.constant 0 : index
    %c0_7 = arith.constant 0 : index
    %9 = vector.load %arg6[%c0_6, %c0_7] : memref<2x1xf32, #tpu.memory_space<vmem>>, vector<2x1xf32>
    %cst_8 = arith.constant dense<0x7F800000> : vector<2xf32>
    %10 = vector.multi_reduction <minimumf>, %3, %cst_8 [1] : vector<2x16xf32> to vector<2xf32>
    %11 = vector.shape_cast %10 : vector<2xf32> to vector<2x1xf32>
    %12 = arith.minimumf %9, %11 : vector<2x1xf32>
    %c0_9 = arith.constant 0 : index
    %c0_10 = arith.constant 0 : index
    %13 = vector.load %arg6[%c0_9, %c0_10] : memref<2x1xf32, #tpu.memory_space<vmem>>, vector<2x1xf32>
    tpu.vector_store %arg6[%c0_9, %c0_10], %12 {strides = array<i32>} : memref<2x1xf32, #tpu.memory_space<vmem>>, vector<2x1xf32>,
    %c0_i32_11 = arith.constant 0 : i32
    %14 = arith.cmpi eq, %arg0, %c0_i32_11 : i32
    %15 = arith.extui %14 : i1 to i32
    %c0_i32_12 = arith.constant 0 : i32
    %16 = arith.cmpi ne, %15, %c0_i32_12 : i32
    scf.if %16 {
      %c0_13 = arith.constant 0 : index
      %c0_14 = arith.constant 0 : index
      %17 = vector.load %arg5[%c0_13, %c0_14] : memref<2x1xf32, #tpu.memory_space<vmem>>, vector<2x1xf32>
      %c0_15 = arith.constant 0 : index
      %c0_16 = arith.constant 0 : index
      %18 = vector.load %arg6[%c0_15, %c0_16] : memref<2x1xf32, #tpu.memory_space<vmem>>, vector<2x1xf32>
      %c0_17 = arith.constant 0 : index
      %19 = memref.load %arg1[%c0_17] : memref<2xf32, #tpu.memory_space<smem>>
      %20 = vector.broadcast %19 : f32 to vector<2x1xf32>
      %21 = arith.mulf %20, %17 : vector<2x1xf32>
      %22 = vector.broadcast %19 : f32 to vector<2x1xf32>
      %23 = arith.mulf %22, %18 : vector<2x1xf32>
      %24 = arith.maximumf %21, %23 : vector<2x1xf32>
      %c0_18 = arith.constant 0 : index
      %25 = memref.load %arg2[%c0_18] : memref<2xf32, #tpu.memory_space<smem>>
      %26 = vector.broadcast %25 : f32 to vector<2x1xf32>
      %27 = arith.addf %24, %26 : vector<2x1xf32>
      %cst_19 = arith.constant 0.000000e+00 : f32
      %28 = vector.broadcast %cst_19 : f32 to vector<2x1xf32>
      %29 = arith.maximumf %27, %28 : vector<2x1xf32>
      %c0_20 = arith.constant 0 : index
      %c0_21 = arith.constant 0 : index
      %30 = vector.load %arg4[%c0_20, %c0_21] : memref<4x1xf32, #tpu.memory_space<vmem>>, vector<2x1xf32>
      tpu.vector_store %arg4[%c0_20, %c0_21], %29 {strides = array<i32>} : memref<4x1xf32, #tpu.memory_space<vmem>>, vector<2x1xf32>,
      %c1 = arith.constant 1 : index
      %31 = memref.load %arg1[%c1] : memref<2xf32, #tpu.memory_space<smem>>
      %32 = vector.broadcast %31 : f32 to vector<2x1xf32>
      %33 = arith.mulf %32, %17 : vector<2x1xf32>
      %34 = vector.broadcast %31 : f32 to vector<2x1xf32>
      %35 = arith.mulf %34, %18 : vector<2x1xf32>
      %36 = arith.maximumf %33, %35 : vector<2x1xf32>
      %c1_22 = arith.constant 1 : index
      %37 = memref.load %arg2[%c1_22] : memref<2xf32, #tpu.memory_space<smem>>
      %38 = vector.broadcast %37 : f32 to vector<2x1xf32>
      %39 = arith.addf %36, %38 : vector<2x1xf32>
      %cst_23 = arith.constant 0.000000e+00 : f32
      %40 = vector.broadcast %cst_23 : f32 to vector<2x1xf32>
      %41 = arith.maximumf %39, %40 : vector<2x1xf32>
      %c2 = arith.constant 2 : index
      %c0_24 = arith.constant 0 : index
      %42 = vector.load %arg4[%c2, %c0_24] : memref<4x1xf32, #tpu.memory_space<vmem>>, vector<2x1xf32>
      tpu.vector_store %arg4[%c2, %c0_24], %41 {strides = array<i32>} : memref<4x1xf32, #tpu.memory_space<vmem>>, vector<2x1xf32>,
    } else {
    }
    return
  }
  func.func @transform_0(%arg0: i32) -> i32 {
    %c0_i32 = arith.constant 0 : i32
    %c0_i32_0 = arith.constant 0 : i32
    return %c0_i32 : i32
  }
  func.func @transform_1(%arg0: i32) -> i32 {
    %c0_i32 = arith.constant 0 : i32
    %c0_i32_0 = arith.constant 0 : i32
    return %c0_i32 : i32
  }
  func.func @transform_2(%arg0: i32) -> (i32, i32) {
    %c0_i32 = arith.constant 0 : i32
    %c0_i32_0 = arith.constant 0 : i32
    return %c0_i32, %arg0 : i32, i32
  }
  func.func @transform_3(%arg0: i32) -> (i32, i32) {
    %c0_i32 = arith.constant 0 : i32
    %c0_i32_0 = arith.constant 0 : i32
    %c0_i32_1 = arith.constant 0 : i32
    return %c0_i32, %c0_i32_0 : i32, i32
  }
}

</mosaic_0001>

<llo_original>
// kernel: forward.1
$region0: #{forward.1}
  #allocation0 [shape = 'u32[]', space=smem, size = 0x4, offset = 0x4, fixed_abs, tag = 'smem constant byte address 0x4 - core index']
  #allocation1 [shape = 'u32[72,128]{1,0:T(1,128)}', space=vmem, size = 0x9000, scoped, tag = 'internal scratch']
  #allocation2 [shape = 'f32[2,1]{1,0:T(2,128)}', space=vmem, size = 0x400, scoped, tag = 'scratch operand']
  #allocation3 [shape = 'f32[2,1]{1,0:T(2,128)}', space=vmem, size = 0x400, scoped, tag = 'scratch operand']
  %s0 = inlined_call_operand.vmem [shape: f32[2], index: 0, kind: input, shape index: {}]
  %s1 = inlined_call_operand.vmem [shape: f32[2], index: 1, kind: input, shape index: {}]
  %s2 = inlined_call_operand.vmem [shape: f32[2,16], index: 2, kind: input, shape index: {}]
  %s3 = inlined_call_operand.vmem [shape: f32[4,1], index: 3, kind: output, shape index: {}]
  %s4 = sld [smem:[#allocation0]]
  $region38: #{forward.1} parent=0
    _
  %s6 = ssub.s32 1, %s4
  %s7 = scalar_select 0, %s6, %s4
  $region1: #{forward.1} parent=0
    #allocation4 [shape = 'u8[512]{0}', space=smem, size = 0x200, scoped, tag = 'input window, operand 0, single buffered']
    #allocation5 [shape = 's32[1]{0}', space=sflag, size = 0x4, scoped, tag = 'scoped memory for forward.1']
    #allocation6 [shape = 'u8[512]{0}', space=smem, size = 0x200, scoped, tag = 'input window, operand 1, single buffered']
    #allocation7 [shape = 's32[1]{0}', space=sflag, size = 0x4, scoped, tag = 'scoped memory for forward.1']
    %8 = vsyncpa [#allocation5], 0
    %9 = vsyncpa [#allocation7], 0
    // Predicated region
    $region2: #{forward.1} parent=1 // pred_check
      _
    $region3: #{forward.1} parent=1 // pred_check_branch
      %11 = sbr.rel (0) target = $region5
    $region4: #{forward.1} parent=1 // pred_region
      %13 = vsyncadd [#allocation5], 0
      %s15 = sshll.u32 %s0, 4
      %s16 = int_to_ptr.vmem [resolvable:$true] %s15
      %18 = dma.vmem_to_smem %s16, 16, [#allocation4], [#allocation5]
    $region5: #{forward.1} parent=1 // pred_fallthru
      _
    // Predicated region
    $region6: #{forward.1} parent=1 // pred_check
      _
    $region7: #{forward.1} parent=1 // pred_check_branch
      %20 = sbr.rel (0) target = $region9
    $region8: #{forward.1} parent=1 // pred_region
      %22 = vsyncadd [#allocation7], 0
      %s24 = sshll.u32 %s1, 4
      %s25 = int_to_ptr.vmem [resolvable:$true] %s24
      %27 = dma.vmem_to_smem %s25, 16, [#allocation6], [#allocation7]
    $region9: #{forward.1} parent=1 // pred_fallthru
      _
    // Predicated region
    $region10: #{forward.1} parent=1 // pred_check
      _
    $region11: #{forward.1} parent=1 // pred_check_branch
      %29 = sbr.rel (0) target = $region13
    $region12: #{forward.1} parent=1 // pred_region
      _
    $region13: #{forward.1} parent=1 // pred_fallthru
      _
    // Predicated region
    $region14: #{forward.1} parent=1 // pred_check
      _
    $region15: #{forward.1} parent=1 // pred_check_branch
      %31 = sbr.rel (0) target = $region17
    $region16: #{forward.1} parent=1 // pred_region
      %33 = dma.done [#allocation5], 16
    $region17: #{forward.1} parent=1 // pred_fallthru
      _
    // Predicated region
    $region18: #{forward.1} parent=1 // pred_check
      _
    $region19: #{forward.1} parent=1 // pred_check_branch
      %35 = sbr.rel (0) target = $region21
    $region20: #{forward.1} parent=1 // pred_region
      %37 = dma.done [#allocation7], 16
    $region21: #{forward.1} parent=1 // pred_fallthru
      _
    %38 = sfence
    %p39 = scmp.eq.s32.totalorder 0, 0
    // Predicated region
    $region22: #{forward.1} parent=1 // pred_check
      %p40 = pneg %p39
    $region23: #{forward.1} parent=1 // pred_check_branch
      %42 = sbr.rel (%p40) target = $region25
    $region24: #{forward.1} parent=1 // pred_region
      %vm43 = vcmask 1024
      %44 = vst.msk [vmem:[#allocation2] sm:$0x3] %vm43, -inf
      %45 = vst.msk [vmem:[#allocation3] sm:$0x3] %vm43, inf
    $region25: #{forward.1} parent=1 // pred_fallthru
      _
    %v46 = vld [vmem:[%s2] sm:$0x3]
    %v47 = vld [vmem:[#allocation2] sm:$0x3]
    %vm48 = vcmask 123904
    %v49 = vsel %vm48, %v46, -inf
    %50 = vmax.xlane.f32.xlu0 %v49
    %v51 = vpop.xlane.xlu0 %50
    %v52 = vmax.f32 %v47, %v51
    %vm53 = vcmask 1024
    %54 = vst.msk [vmem:[#allocation2] sm:$0x3] %vm53, %v52
    %v55 = vld [vmem:[#allocation3] sm:$0x3]
    %v56 = vsel %vm48, %v46, inf
    %57 = vmin.xlane.f32.xlu0 %v56
    %v58 = vpop.xlane.xlu0 %57
    %v59 = vmin.f32 %v55, %v58
    %60 = vst.msk [vmem:[#allocation3] sm:$0x3] %vm53, %v59
    // Predicated region
    $region26: #{forward.1} parent=1 // pred_check
      %p61 = pneg %p39
    $region27: #{forward.1} parent=1 // pred_check_branch
      %63 = sbr.rel (%p61) target = $region29
    $region28: #{forward.1} parent=1 // pred_region
      %v64 = vld [vmem:[#allocation2] sm:$0x3]
      %v65 = vld [vmem:[#allocation3] sm:$0x3]
      %s66 = sld [smem:[#allocation4]]
      %v67 = vstv %s66
      %v68 = vmul.f32 %v67, %v64
      %v69 = vmul.f32 %v67, %v65
      %v70 = vmax.f32 %v68, %v69
      %s71 = sld [smem:[#allocation6]]
      %v72 = vstv %s71
      %v73 = vadd.f32 %v70, %v72
      %v74 = vmax.f32 %v73, 0.0
      %75 = vst.msk [vmem:[%s3] sm:$0x3] %vm53, %v74
      %s76 = sld [smem:[#allocation4 + $0x1]]
      %v77 = vstv %s76
      %v78 = vmul.f32 %v77, %v64
      %v79 = vmul.f32 %v77, %v65
      %v80 = vmax.f32 %v78, %v79
      %s81 = sld [smem:[#allocation6 + $0x1]]
      %v82 = vstv %s81
      %v83 = vadd.f32 %v80, %v82
      %v84 = vmax.f32 %v83, 0.0
      %85 = vst.msk [vmem:[%s3 + $0x2] sm:$0x3] %vm53, %v84
    $region29: #{forward.1} parent=1 // pred_fallthru
      _
    // Predicated region
    $region30: #{forward.1} parent=1 // pred_check
      _
    $region31: #{forward.1} parent=1 // pred_check_branch
      %87 = sbr.rel (0) target = $region33
    $region32: #{forward.1} parent=1 // pred_region
      _
    $region33: #{forward.1} parent=1 // pred_fallthru
      _
    // Predicated region
    $region34: #{forward.1} parent=1 // pred_check
      _
    $region35: #{forward.1} parent=1 // pred_check_branch
      %89 = sbr.rel (0) target = $region37
    $region36: #{forward.1} parent=1 // pred_region
      _
    $region37: #{forward.1} parent=1 // pred_fallthru
      _
    %90 = vsyncpa [#allocation5], 1
    %91 = vsyncpa [#allocation7], 1

</llo_original>
